<compile_context>
chip_gen: v7x
topology: tpu7x:2x2x1
jax: 0.10.0
libtpu: 0.0.40
codegen_flags: <defaults>
</compile_context>

<pallas_src>
import math
import functools

import numpy as np
import jax
import jax.numpy as jnp
from jax import lax
from jax.experimental import pallas as pl
from jax.experimental.pallas import tpu as pltpu

pINF = 1000.0
_EPS = 1e-8
_ASINH_2_15 = math.asinh(2 ** 15)
_PAD_SENTINEL = 1e16          # "y_time" of sentinel (padded) label columns
_MINE_MASK = 1e18             # mask value used during hard-negative mining
_DN = (((1,), (1,)), ((), ()))  # contract last dims: x @ y.T without transposing y


def _exp_map0(x, curv):
    """Lorentz exponential map at the origin (space components), MERU-style."""
    xnorm = jnp.sqrt(jnp.sum(x * x, axis=-1, keepdims=True))
    rc_xnorm = jnp.sqrt(curv) * xnorm
    s = jnp.clip(rc_xnorm, _EPS, _ASINH_2_15)
    sinh_s = 0.5 * (jnp.exp(s) - jnp.exp(-s))
    factor = sinh_s / jnp.maximum(rc_xnorm, _EPS)
    return x * factor


def _acosh_scaled(z, inv_sqrt_curv):
    """acosh(z)/sqrt(curv) on small (tm,1) tiles; cancellation-safe (z-1)(z+1) form."""
    zm1 = jnp.maximum(z - 1.0, _EPS)
    return jnp.log(z + jnp.sqrt(zm1 * (z + 1.0))) * inv_sqrt_curv


def _cl_loss_kernel(text_ref, tgt_ref, y_ref, out_ref, *,
                    curv, alpha, inv_temp, neg_samples, h_real, mxu_dtype):
    tm, h_pad = text_ref.shape
    c_pad = y_ref.shape[0]
    inv_sqrt_curv = 1.0 / math.sqrt(curv)

    # ---- text exp_map0: per-row scalar factor, alpha folded into the factor ----
    t = text_ref[...].astype(jnp.float32)                              # (tm, h_pad)
    sq = jnp.sum(t * t, axis=-1, keepdims=True) * (alpha * alpha)      # (tm, 1)
    rc = jnp.sqrt(curv * sq)
    s = jnp.clip(rc, _EPS, _ASINH_2_15)
    sinh_s = 0.5 * (jnp.exp(s) - jnp.exp(-s))
    factor = sinh_s / jnp.maximum(rc, _EPS)                            # (tm, 1)
    x = t * (alpha * factor)                                           # (tm, h_pad)
    x_time = jnp.sqrt(1.0 / curv + factor * factor * sq)               # (tm, 1)

    # Fold x_time into the spare padded lane h_real; the label table's lane
    # h_real already carries -y_time, so a single MXU matmul produces the
    # Lorentz inner product <x, y>_L directly (no (tm, c) broadcast mul/sub).
    lane = lax.broadcasted_iota(jnp.int32, (1, h_pad), 1)
    x_full = jnp.where(lane == h_real, x_time, x)                      # (tm, h_pad)

    xyl = lax.dot_general(x_full.astype(mxu_dtype), y_ref[...], _DN,
                          preferred_element_type=jnp.float32)          # (tm, c_pad)
    z = jnp.maximum(-curv * xyl, 1.0 + _EPS)        # monotone in distance -> mine on z

    # ---- positive column value from the int32 target tile (no dense one-hot) ----
    col = lax.broadcasted_iota(jnp.int32, (tm, c_pad), 1)
    colf = col.astype(jnp.float32)
    tgt = tgt_ref[...]                                                  # (tm, 1) int32
    pos_mask = col == tgt
    pos_z = jnp.sum(jnp.where(pos_mask, z, 0.0), axis=-1, keepdims=True)

    # ---- hard-negative mining on z: exact values, lowest-column tie-break ----
    work = jnp.where(pos_mask, _MINE_MASK, z)
    neg_zs = []
    for _ in range(neg_samples):                                        # static, small k
        cur = jnp.min(work, axis=-1, keepdims=True)                     # exact min value
        neg_zs.append(cur)
        is_min = work == cur
        first = jnp.min(jnp.where(is_min, colf, float(c_pad)),
                        axis=-1, keepdims=True)
        work = jnp.where(is_min & (colf == first), _MINE_MASK, work)

    # ---- acosh + 1/sqrt(curv) only on the (k+1) selected values ----
    d_pos = _acosh_scaled(pos_z, inv_sqrt_curv)
    d_negs = [_acosh_scaled(v, inv_sqrt_curv) for v in neg_zs]

    # ---- stabilized InfoNCE:  loss = log(denom) + d_pos/temp ----
    mn = jnp.minimum(d_pos, d_negs[0])
    denom = jnp.exp(-(d_pos - mn) * inv_temp)
    for d in d_negs:
        denom = denom + jnp.exp(-(d - mn) * inv_temp)
    out_ref[...] = (jnp.log(denom) + (d_pos - mn) * inv_temp).astype(out_ref.dtype)


def _pick_tm(m):
    """Row tile: full tile for small m, else snapped to 128/256 (full MXU passes)."""
    if m <= 128:
        return max(8, -(-m // 8) * 8)
    if m <= 2048:
        return 128
    return 256


def _vmem_limit_bytes():
    try:
        cap = pltpu.get_tpu_info().vmem_capacity_bytes
    except Exception:
        cap = 64 * 1024 * 1024
    # leave ~16 MiB headroom for Mosaic internal scratch; cap at 100 MiB.
    return int(max(32 * 1024 * 1024, min(cap - 16 * 1024 * 1024, 100 * 1024 * 1024)))


def cl_loss(text_embeddings, label_embeddings, target_labels, *,
            curv_init=1.0, cl_temp=1.0, neg_samples=2, tm=None,
            mxu_dtype=jnp.bfloat16):
    """Pallas implementation of CLloss.forward (args.pool == 0)."""
    m, h = text_embeddings.shape
    c, h2 = label_embeddings.shape
    assert h == h2

    # Deterministic parameter init, exactly as in __init__:
    #   curv = log(curv_init)         -> forward uses curv.exp() = curv_init
    #   text/label_alpha = log(h^-.5) -> forward uses alpha.exp() = h^-0.5
    curv = float(curv_init)
    alpha = float(h ** (-0.5))
    # TODO(synk): args.pool in {1,2} (pooler_fc + dropout + relu/gelu) not
    # implemented; dropout is stochastic and the default path (pool == 0) skips it.
    # TODO(synk): for very large class counts on v7x, add a second "arbitrary"
    # grid axis over c-chunks with a running min-k instead of a resident table.

    if tm is None:
        tm = _pick_tm(m)
    tm = max(8, (int(tm) // 8) * 8)

    f32 = jnp.float32
    # ---- hoisted label-side work: exp_map0 + time, packed into one table ----
    y = _exp_map0(label_embeddings.astype(f32) * alpha, curv)                   # (c, h)
    y_time = jnp.sqrt(1.0 / curv + jnp.sum(y * y, axis=-1))                     # (c,)

    h_pad = -(-(h + 1) // 128) * 128      # >= h+1: spare lane carries the time component
    c_pad = -(-c // 128) * 128            # full, unmasked (tm, c) vregs + min reductions
    y_tab = jnp.pad(y, ((0, 0), (0, h_pad - h)))
    y_tab = y_tab.at[:, h].set(-y_time)   # lane h carries -y_time
    if c_pad != c:
        pad_rows = jnp.zeros((c_pad - c, h_pad), f32).at[:, h].set(-_PAD_SENTINEL)
        y_tab = jnp.concatenate([y_tab, pad_rows], axis=0)                      # (c_pad, h_pad)

    # ---- pad text rows / hidden (padded rows sliced off afterwards) ----
    m_pad = -(-m // tm) * tm
    text = jnp.pad(text_embeddings.astype(f32), ((0, m_pad - m), (0, h_pad - h)))
    tgt2d = jnp.pad(target_labels.astype(jnp.int32), ((0, m_pad - m),)).reshape(m_pad, 1)
    n_tiles = m_pad // tm

    kernel = functools.partial(
        _cl_loss_kernel, curv=curv, alpha=alpha, inv_temp=1.0 / float(cl_temp),
        neg_samples=int(neg_samples), h_real=h, mxu_dtype=mxu_dtype)

    def _call(single_buffer_table):
        y_kwargs = dict(pipeline_mode=pl.Buffered(1)) if single_buffer_table else {}
        fn = pl.pallas_call(
            kernel,
            out_shape=jax.ShapeDtypeStruct((m_pad, 1), jnp.float32),
            grid=(n_tiles,),
            in_specs=[
                pl.BlockSpec((tm, h_pad), lambda i: (i, 0)),            # text rows tile
                pl.BlockSpec((tm, 1), lambda i: (i, 0)),                # per-row target (int32)
                pl.BlockSpec((c_pad, h_pad), lambda i: (0, 0),          # resident label table
                             **y_kwargs),
            ],
            out_specs=pl.BlockSpec((tm, 1), lambda i: (i, 0)),
            compiler_params=pltpu.CompilerParams(
                dimension_semantics=("parallel",),
                vmem_limit_bytes=_vmem_limit_bytes()),
        )
        return fn(text.astype(mxu_dtype), tgt2d, y_tab.astype(mxu_dtype))

    try:
        out = jax.block_until_ready(_call(True))
    except Exception:
        # pl.Buffered(1) / pipeline_mode not supported on this build: fall back
        # to the default double-buffered resident table.
        out = jax.block_until_ready(_call(False))

    return out.reshape(m_pad)[:m]                                       # (m,) like torch


# ------------------------- pure-JAX reference (torch semantics) ------------
def cl_loss_ref(text, label, targets, *, curv=1.0, cl_temp=1.0, neg_samples=2):
    h = text.shape[1]
    alpha = h ** (-0.5)
    x = _exp_map0(text * alpha, curv)
    y = _exp_map0(label * alpha, curv)
    x_time = jnp.sqrt(1.0 / curv + jnp.sum(x * x, -1, keepdims=True))
    y_time = jnp.sqrt(1.0 / curv + jnp.sum(y * y, -1, keepdims=True))
    xyl = x @ y.T - x_time * y_time.T
    dist = jnp.arccosh(jnp.maximum(-curv * xyl, 1.0 + _EPS)) / jnp.sqrt(curv)

    losses = []
    for i in range(text.shape[0]):
        row = dist[i]
        pos = int(targets[i])
        neg_row = row.at[pos].set(pINF)
        neg_idx = jnp.argsort(neg_row)[:neg_samples]
        pos_score = -row[pos] / cl_temp
        neg_scores = -row[neg_idx] / cl_temp
        denom = jnp.exp(pos_score) + jnp.sum(jnp.exp(neg_scores))
        losses.append(-jnp.log(jnp.exp(pos_score) / denom))
    return jnp.stack(losses)


if __name__ == "__main__":
    m, c, h = 16, 16, 32        # texts, classes, hidden (small; embed_dim := h)
    neg_sample = 2

    key = jax.random.PRNGKey(0)
    k1, k2, k3 = jax.random.split(key, 3)
    text = jax.random.normal(k1, (m, h), dtype=jnp.float32)
    label = jax.random.normal(k2, (c, h), dtype=jnp.float32)
    targets = jax.random.randint(k3, (m,), 0, c)

    ref = cl_loss_ref(text, label, targets, curv=1.0, cl_temp=1.0,
                      neg_samples=neg_sample)

    # exact-precision path (f32 MXU operands): tight check against torch semantics
    loss_f32 = cl_loss(text, label, targets, curv_init=1.0, cl_temp=1.0,
                       neg_samples=neg_sample, mxu_dtype=jnp.float32)
    loss_f32 = jax.block_until_ready(loss_f32)
    np.testing.assert_allclose(np.asarray(loss_f32), np.asarray(ref),
                               rtol=2e-4, atol=2e-5)

    # default bf16-operand path (MXU-friendly on v6e/v7x): loose check
    loss_bf16 = cl_loss(text, label, targets, curv_init=1.0, cl_temp=1.0,
                        neg_samples=neg_sample)
    loss_bf16 = jax.block_until_ready(loss_bf16)
    np.testing.assert_allclose(np.asarray(loss_bf16), np.asarray(ref),
                               rtol=5e-2, atol=5e-2)

    print("KERNEL_OK")
</pallas_src>

<mosaic_0001>
module attributes {stable_mosaic.version = 11 : i64} {
  func.func @_cl_loss_kernel(%arg0: i32, %arg1: memref<16x128xf32, #tpu.memory_space<vmem>>, %arg2: memref<16x1xi32, #tpu.memory_space<vmem>>, %arg3: memref<128x128xf32, #tpu.memory_space<vmem>>, %arg4: memref<16x1xf32, #tpu.memory_space<vmem>>) attributes {dimension_semantics = [#tpu.dimension_semantics<parallel>], iteration_bounds = array<i64: 1>, scalar_prefetch = 0 : i64, scratch_operands = 0 : i64, tpu.core_type = #tpu.core_type<tc>, window_params = [{transform_indices = @transform_0, window_bounds = array<i64: 16, 128>}, {transform_indices = @transform_1, window_bounds = array<i64: 16, 1>}, {pipeline_mode = #tpu.pipeline_mode<synchronous>, transform_indices = @transform_2, window_bounds = array<i64: 128, 128>}, {transform_indices = @transform_3, window_bounds = array<i64: 16, 1>}]} {
    %c0 = arith.constant 0 : index
    %c0_0 = arith.constant 0 : index
    %0 = vector.load %arg1[%c0, %c0_0] : memref<16x128xf32, #tpu.memory_space<vmem>>, vector<16x128xf32>
    %1 = arith.mulf %0, %0 : vector<16x128xf32>
    %cst = arith.constant dense<0.000000e+00> : vector<16xf32>
    %2 = vector.multi_reduction <add>, %1, %cst [1] : vector<16x128xf32> to vector<16xf32>
    %3 = vector.shape_cast %2 : vector<16xf32> to vector<16x1xf32>
    %cst_1 = arith.constant 3.125000e-02 : f32
    %4 = vector.broadcast %cst_1 : f32 to vector<16x1xf32>
    %5 = arith.mulf %3, %4 : vector<16x1xf32>
    %cst_2 = arith.constant 1.000000e+00 : f32
    %6 = vector.broadcast %cst_2 : f32 to vector<16x1xf32>
    %7 = arith.mulf %6, %5 : vector<16x1xf32>
    %8 = math.sqrt %7 : vector<16x1xf32>
    %cst_3 = arith.constant 9.99999993E-9 : f32
    %cst_4 = arith.constant 11.0903549 : f32
    %9 = vector.broadcast %cst_3 : f32 to vector<16x1xf32>
    %10 = arith.maximumf %9, %8 : vector<16x1xf32>
    %11 = vector.broadcast %cst_4 : f32 to vector<16x1xf32>
    %12 = arith.minimumf %11, %10 : vector<16x1xf32>
    %13 = math.exp %12 : vector<16x1xf32>
    %cst_5 = arith.constant 0.000000e+00 : f32
    %14 = vector.broadcast %cst_5 : f32 to vector<16x1xf32>
    %15 = arith.subf %14, %12 : vector<16x1xf32>
    %16 = math.exp %15 : vector<16x1xf32>
    %17 = arith.subf %13, %16 : vector<16x1xf32>
    %cst_6 = arith.constant 5.000000e-01 : f32
    %18 = vector.broadcast %cst_6 : f32 to vector<16x1xf32>
    %19 = arith.mulf %18, %17 : vector<16x1xf32>
    %cst_7 = arith.constant 9.99999993E-9 : f32
    %20 = vector.broadcast %cst_7 : f32 to vector<16x1xf32>
    %21 = arith.maximumf %8, %20 : vector<16x1xf32>
    %22 = arith.divf %19, %21 : vector<16x1xf32>
    %cst_8 = arith.constant 0.176776692 : f32
    %23 = vector.broadcast %cst_8 : f32 to vector<16x1xf32>
    %24 = arith.mulf %23, %22 : vector<16x1xf32>
    %25 = vector.broadcast %24 : vector<16x1xf32> to vector<16x128xf32>
    %26 = arith.mulf %0, %25 : vector<16x128xf32>
    %27 = arith.mulf %22, %22 : vector<16x1xf32>
    %28 = arith.mulf %27, %5 : vector<16x1xf32>
    %cst_9 = arith.constant 1.000000e+00 : f32
    %29 = vector.broadcast %cst_9 : f32 to vector<16x1xf32>
    %30 = arith.addf %29, %28 : vector<16x1xf32>
    %31 = math.sqrt %30 : vector<16x1xf32>
    %32 = tpu.iota {dimensions = array<i32: 1>} : vector<1x128xi32>
    %c32_i32 = arith.constant 32 : i32
    %33 = vector.broadcast %c32_i32 : i32 to vector<1x128xi32>
    %34 = arith.cmpi eq, %32, %33 : vector<1x128xi32>
    %35 = vector.shape_cast %34 : vector<1x128xi1> to vector<1x128xi1>
    %36 = vector.broadcast %35 : vector<1x128xi1> to vector<16x128xi1>
    %37 = vector.shape_cast %31 : vector<16x1xf32> to vector<16x1xf32>
    %38 = vector.broadcast %37 : vector<16x1xf32> to vector<16x128xf32>
    %39 = arith.select %36, %38, %26 : vector<16x128xi1>, vector<16x128xf32>
    %c0_10 = arith.constant 0 : index
    %c0_11 = arith.constant 0 : index
    %40 = vector.load %arg3[%c0_10, %c0_11] : memref<128x128xf32, #tpu.memory_space<vmem>>, vector<128x128xf32>
    %cst_12 = arith.constant dense<0.000000e+00> : vector<16x128xf32>
    %41 = tpu.matmul %39, %40, %cst_12 {dimension_numbers = #tpu.dot_dimension_numbers<[1], [1], [0], [0], [0, 0, 1, 0], [], []>} : vector<16x128xf32>, vector<128x128xf32>, vector<16x128xf32> -> vector<16x128xf32>
    %cst_13 = arith.constant -1.000000e+00 : f32
    %42 = vector.broadcast %cst_13 : f32 to vector<16x128xf32>
    %43 = arith.mulf %42, %41 : vector<16x128xf32>
    %cst_14 = arith.constant 1.000000e+00 : f32
    %44 = vector.broadcast %cst_14 : f32 to vector<16x128xf32>
    %45 = arith.maximumf %43, %44 : vector<16x128xf32>
    %46 = tpu.iota {dimensions = array<i32: 1>} : vector<16x128xi32>
    %47 = arith.sitofp %46 : vector<16x128xi32> to vector<16x128xf32>
    %c0_15 = arith.constant 0 : index
    %c0_16 = arith.constant 0 : index
    %48 = vector.load %arg2[%c0_15, %c0_16] : memref<16x1xi32, #tpu.memory_space<vmem>>, vector<16x1xi32>
    %49 = vector.broadcast %48 : vector<16x1xi32> to vector<16x128xi32>
    %50 = arith.cmpi eq, %46, %49 : vector<16x128xi32>
    %cst_17 = arith.constant 0.000000e+00 : f32
    %51 = vector.broadcast %cst_17 : f32 to vector<16x128xf32>
    %52 = arith.select %50, %45, %51 : vector<16x128xi1>, vector<16x128xf32>
    %cst_18 = arith.constant dense<0.000000e+00> : vector<16xf32>
    %53 = vector.multi_reduction <add>, %52, %cst_18 [1] : vector<16x128xf32> to vector<16xf32>
    %54 = vector.shape_cast %53 : vector<16xf32> to vector<16x1xf32>
    %cst_19 = arith.constant 9.99999984E+17 : f32
    %55 = vector.broadcast %cst_19 : f32 to vector<16x128xf32>
    %56 = arith.select %50, %55, %45 : vector<16x128xi1>, vector<16x128xf32>
    %cst_20 = arith.constant dense<0x7F800000> : vector<16xf32>
    %57 = vector.multi_reduction <minimumf>, %56, %cst_20 [1] : vector<16x128xf32> to vector<16xf32>
    %58 = vector.shape_cast %57 : vector<16xf32> to vector<16x1xf32>
    %59 = vector.broadcast %58 : vector<16x1xf32> to vector<16x128xf32>
    %60 = arith.cmpf oeq, %56, %59 : vector<16x128xf32>
    %cst_21 = arith.constant 1.280000e+02 : f32
    %61 = vector.broadcast %cst_21 : f32 to vector<16x128xf32>
    %62 = arith.select %60, %47, %61 : vector<16x128xi1>, vector<16x128xf32>
    %cst_22 = arith.constant dense<0x7F800000> : vector<16xf32>
    %63 = vector.multi_reduction <minimumf>, %62, %cst_22 [1] : vector<16x128xf32> to vector<16xf32>
    %64 = vector.shape_cast %63 : vector<16xf32> to vector<16x1xf32>
    %65 = vector.broadcast %64 : vector<16x1xf32> to vector<16x128xf32>
    %66 = arith.cmpf oeq, %47, %65 : vector<16x128xf32>
    %67 = arith.andi %60, %66 : vector<16x128xi1>
    %cst_23 = arith.constant 9.99999984E+17 : f32
    %68 = vector.broadcast %cst_23 : f32 to vector<16x128xf32>
    %69 = arith.select %67, %68, %56 : vector<16x128xi1>, vector<16x128xf32>
    %cst_24 = arith.constant dense<0x7F800000> : vector<16xf32>
    %70 = vector.multi_reduction <minimumf>, %69, %cst_24 [1] : vector<16x128xf32> to vector<16xf32>
    %71 = vector.shape_cast %70 : vector<16xf32> to vector<16x1xf32>
    %cst_25 = arith.constant 1.000000e+00 : f32
    %72 = vector.broadcast %cst_25 : f32 to vector<16x1xf32>
    %73 = arith.subf %54, %72 : vector<16x1xf32>
    %cst_26 = arith.constant 9.99999993E-9 : f32
    %74 = vector.broadcast %cst_26 : f32 to vector<16x1xf32>
    %75 = arith.maximumf %73, %74 : vector<16x1xf32>
    %cst_27 = arith.constant 1.000000e+00 : f32
    %76 = vector.broadcast %cst_27 : f32 to vector<16x1xf32>
    %77 = arith.addf %54, %76 : vector<16x1xf32>
    %78 = arith.mulf %75, %77 : vector<16x1xf32>
    %79 = math.sqrt %78 : vector<16x1xf32>
    %80 = arith.addf %54, %79 : vector<16x1xf32>
    %81 = math.log %80 : vector<16x1xf32>
    %cst_28 = arith.constant 1.000000e+00 : f32
    %82 = vector.broadcast %cst_28 : f32 to vector<16x1xf32>
    %83 = arith.mulf %81, %82 : vector<16x1xf32>
    %cst_29 = arith.constant 1.000000e+00 : f32
    %84 = vector.broadcast %cst_29 : f32 to vector<16x1xf32>
    %85 = arith.subf %58, %84 : vector<16x1xf32>
    %cst_30 = arith.constant 9.99999993E-9 : f32
    %86 = vector.broadcast %cst_30 : f32 to vector<16x1xf32>
    %87 = arith.maximumf %85, %86 : vector<16x1xf32>
    %cst_31 = arith.constant 1.000000e+00 : f32
    %88 = vector.broadcast %cst_31 : f32 to vector<16x1xf32>
    %89 = arith.addf %58, %88 : vector<16x1xf32>
    %90 = arith.mulf %87, %89 : vector<16x1xf32>
    %91 = math.sqrt %90 : vector<16x1xf32>
    %92 = arith.addf %58, %91 : vector<16x1xf32>
    %93 = math.log %92 : vector<16x1xf32>
    %cst_32 = arith.constant 1.000000e+00 : f32
    %94 = vector.broadcast %cst_32 : f32 to vector<16x1xf32>
    %95 = arith.mulf %93, %94 : vector<16x1xf32>
    %cst_33 = arith.constant 1.000000e+00 : f32
    %96 = vector.broadcast %cst_33 : f32 to vector<16x1xf32>
    %97 = arith.subf %71, %96 : vector<16x1xf32>
    %cst_34 = arith.constant 9.99999993E-9 : f32
    %98 = vector.broadcast %cst_34 : f32 to vector<16x1xf32>
    %99 = arith.maximumf %97, %98 : vector<16x1xf32>
    %cst_35 = arith.constant 1.000000e+00 : f32
    %100 = vector.broadcast %cst_35 : f32 to vector<16x1xf32>
    %101 = arith.addf %71, %100 : vector<16x1xf32>
    %102 = arith.mulf %99, %101 : vector<16x1xf32>
    %103 = math.sqrt %102 : vector<16x1xf32>
    %104 = arith.addf %71, %103 : vector<16x1xf32>
    %105 = math.log %104 : vector<16x1xf32>
    %cst_36 = arith.constant 1.000000e+00 : f32
    %106 = vector.broadcast %cst_36 : f32 to vector<16x1xf32>
    %107 = arith.mulf %105, %106 : vector<16x1xf32>
    %108 = arith.minimumf %83, %95 : vector<16x1xf32>
    %109 = arith.subf %83, %108 : vector<16x1xf32>
    %cst_37 = arith.constant 0.000000e+00 : f32
    %110 = vector.broadcast %cst_37 : f32 to vector<16x1xf32>
    %111 = arith.subf %110, %109 : vector<16x1xf32>
    %cst_38 = arith.constant 1.000000e+00 : f32
    %112 = vector.broadcast %cst_38 : f32 to vector<16x1xf32>
    %113 = arith.mulf %111, %112 : vector<16x1xf32>
    %114 = math.exp %113 : vector<16x1xf32>
    %115 = arith.subf %95, %108 : vector<16x1xf32>
    %cst_39 = arith.constant 0.000000e+00 : f32
    %116 = vector.broadcast %cst_39 : f32 to vector<16x1xf32>
    %117 = arith.subf %116, %115 : vector<16x1xf32>
    %cst_40 = arith.constant 1.000000e+00 : f32
    %118 = vector.broadcast %cst_40 : f32 to vector<16x1xf32>
    %119 = arith.mulf %117, %118 : vector<16x1xf32>
    %120 = math.exp %119 : vector<16x1xf32>
    %121 = arith.addf %114, %120 : vector<16x1xf32>
    %122 = arith.subf %107, %108 : vector<16x1xf32>
    %cst_41 = arith.constant 0.000000e+00 : f32
    %123 = vector.broadcast %cst_41 : f32 to vector<16x1xf32>
    %124 = arith.subf %123, %122 : vector<16x1xf32>
    %cst_42 = arith.constant 1.000000e+00 : f32
    %125 = vector.broadcast %cst_42 : f32 to vector<16x1xf32>
    %126 = arith.mulf %124, %125 : vector<16x1xf32>
    %127 = math.exp %126 : vector<16x1xf32>
    %128 = arith.addf %121, %127 : vector<16x1xf32>
    %129 = math.log %128 : vector<16x1xf32>
    %130 = arith.subf %83, %108 : vector<16x1xf32>
    %cst_43 = arith.constant 1.000000e+00 : f32
    %131 = vector.broadcast %cst_43 : f32 to vector<16x1xf32>
    %132 = arith.mulf %130, %131 : vector<16x1xf32>
    %133 = arith.addf %129, %132 : vector<16x1xf32>
    %c0_44 = arith.constant 0 : index
    %c0_45 = arith.constant 0 : index
    %134 = vector.load %arg4[%c0_44, %c0_45] : memref<16x1xf32, #tpu.memory_space<vmem>>, vector<16x1xf32>
    tpu.vector_store %arg4[%c0_44, %c0_45], %133 {strides = array<i32>} : memref<16x1xf32, #tpu.memory_space<vmem>>, vector<16x1xf32>,
    return
  }
  func.func @transform_0(%arg0: i32) -> (i32, i32) {
    %c0_i32 = arith.constant 0 : i32
    %c0_i32_0 = arith.constant 0 : i32
    return %arg0, %c0_i32 : i32, i32
  }
  func.func @transform_1(%arg0: i32) -> (i32, i32) {
    %c0_i32 = arith.constant 0 : i32
    %c0_i32_0 = arith.constant 0 : i32
    return %arg0, %c0_i32 : i32, i32
  }
  func.func @transform_2(%arg0: i32) -> (i32, i32) {
    %c0_i32 = arith.constant 0 : i32
    %c0_i32_0 = arith.constant 0 : i32
    %c0_i32_1 = arith.constant 0 : i32
    return %c0_i32, %c0_i32_0 : i32, i32
  }
  func.func @transform_3(%arg0: i32) -> (i32, i32) {
    %c0_i32 = arith.constant 0 : i32
    %c0_i32_0 = arith.constant 0 : i32
    return %arg0, %c0_i32 : i32, i32
  }
}

module attributes {stable_mosaic.version = 11 : i64} {
  func.func @_cl_loss_kernel(%arg0: i32, %arg1: memref<16x128xf32, #tpu.memory_space<vmem>>, %arg2: memref<16x1xi32, #tpu.memory_space<vmem>>, %arg3: memref<128x128xf32, #tpu.memory_space<vmem>>, %arg4: memref<16x1xf32, #tpu.memory_space<vmem>>) attributes {dimension_semantics = [#tpu.dimension_semantics<parallel>], iteration_bounds = array<i64: 1>, scalar_prefetch = 0 : i64, scratch_operands = 0 : i64, tpu.core_type = #tpu.core_type<tc>, window_params = [{transform_indices = @transform_0, window_bounds = array<i64: 16, 128>}, {transform_indices = @transform_1, window_bounds = array<i64: 16, 1>}, {pipeline_mode = #tpu.pipeline_mode<synchronous>, transform_indices = @transform_2, window_bounds = array<i64: 128, 128>}, {transform_indices = @transform_3, window_bounds = array<i64: 16, 1>}]} {
    %c0 = arith.constant 0 : index
    %c0_0 = arith.constant 0 : index
    %0 = vector.load %arg1[%c0, %c0_0] : memref<16x128xf32, #tpu.memory_space<vmem>>, vector<16x128xf32>
    %1 = arith.mulf %0, %0 : vector<16x128xf32>
    %cst = arith.constant dense<0.000000e+00> : vector<16xf32>
    %2 = vector.multi_reduction <add>, %1, %cst [1] : vector<16x128xf32> to vector<16xf32>
    %3 = vector.shape_cast %2 : vector<16xf32> to vector<16x1xf32>
    %cst_1 = arith.constant 3.125000e-02 : f32
    %4 = vector.broadcast %cst_1 : f32 to vector<16x1xf32>
    %5 = arith.mulf %3, %4 : vector<16x1xf32>
    %cst_2 = arith.constant 1.000000e+00 : f32
    %6 = vector.broadcast %cst_2 : f32 to vector<16x1xf32>
    %7 = arith.mulf %6, %5 : vector<16x1xf32>
    %8 = math.sqrt %7 : vector<16x1xf32>
    %cst_3 = arith.constant 9.99999993E-9 : f32
    %cst_4 = arith.constant 11.0903549 : f32
    %9 = vector.broadcast %cst_3 : f32 to vector<16x1xf32>
    %10 = arith.maximumf %9, %8 : vector<16x1xf32>
    %11 = vector.broadcast %cst_4 : f32 to vector<16x1xf32>
    %12 = arith.minimumf %11, %10 : vector<16x1xf32>
    %13 = math.exp %12 : vector<16x1xf32>
    %cst_5 = arith.constant 0.000000e+00 : f32
    %14 = vector.broadcast %cst_5 : f32 to vector<16x1xf32>
    %15 = arith.subf %14, %12 : vector<16x1xf32>
    %16 = math.exp %15 : vector<16x1xf32>
    %17 = arith.subf %13, %16 : vector<16x1xf32>
    %cst_6 = arith.constant 5.000000e-01 : f32
    %18 = vector.broadcast %cst_6 : f32 to vector<16x1xf32>
    %19 = arith.mulf %18, %17 : vector<16x1xf32>
    %cst_7 = arith.constant 9.99999993E-9 : f32
    %20 = vector.broadcast %cst_7 : f32 to vector<16x1xf32>
    %21 = arith.maximumf %8, %20 : vector<16x1xf32>
    %22 = arith.divf %19, %21 : vector<16x1xf32>
    %cst_8 = arith.constant 0.176776692 : f32
    %23 = vector.broadcast %cst_8 : f32 to vector<16x1xf32>
    %24 = arith.mulf %23, %22 : vector<16x1xf32>
    %25 = vector.broadcast %24 : vector<16x1xf32> to vector<16x128xf32>
    %26 = arith.mulf %0, %25 : vector<16x128xf32>
    %27 = arith.mulf %22, %22 : vector<16x1xf32>
    %28 = arith.mulf %27, %5 : vector<16x1xf32>
    %cst_9 = arith.constant 1.000000e+00 : f32
    %29 = vector.broadcast %cst_9 : f32 to vector<16x1xf32>
    %30 = arith.addf %29, %28 : vector<16x1xf32>
    %31 = math.sqrt %30 : vector<16x1xf32>
    %32 = tpu.iota {dimensions = array<i32: 1>} : vector<1x128xi32>
    %c32_i32 = arith.constant 32 : i32
    %33 = vector.broadcast %c32_i32 : i32 to vector<1x128xi32>
    %34 = arith.cmpi eq, %32, %33 : vector<1x128xi32>
    %35 = vector.shape_cast %34 : vector<1x128xi1> to vector<1x128xi1>
    %36 = vector.broadcast %35 : vector<1x128xi1> to vector<16x128xi1>
    %37 = vector.shape_cast %31 : vector<16x1xf32> to vector<16x1xf32>
    %38 = vector.broadcast %37 : vector<16x1xf32> to vector<16x128xf32>
    %39 = arith.select %36, %38, %26 : vector<16x128xi1>, vector<16x128xf32>
    %c0_10 = arith.constant 0 : index
    %c0_11 = arith.constant 0 : index
    %40 = vector.load %arg3[%c0_10, %c0_11] : memref<128x128xf32, #tpu.memory_space<vmem>>, vector<128x128xf32>
    %cst_12 = arith.constant dense<0.000000e+00> : vector<16x128xf32>
    %41 = tpu.matmul %39, %40, %cst_12 {dimension_numbers = #tpu.dot_dimension_numbers<[1], [1], [0], [0], [0, 0, 1, 0], [], []>} : vector<16x128xf32>, vector<128x128xf32>, vector<16x128xf32> -> vector<16x128xf32>
    %cst_13 = arith.constant -1.000000e+00 : f32
    %42 = vector.broadcast %cst_13 : f32 to vector<16x128xf32>
    %43 = arith.mulf %42, %41 : vector<16x128xf32>
    %cst_14 = arith.constant 1.000000e+00 : f32
    %44 = vector.broadcast %cst_14 : f32 to vector<16x128xf32>
    %45 = arith.maximumf %43, %44 : vector<16x128xf32>
    %46 = tpu.iota {dimensions = array<i32: 1>} : vector<16x128xi32>
    %47 = arith.sitofp %46 : vector<16x128xi32> to vector<16x128xf32>
    %c0_15 = arith.constant 0 : index
    %c0_16 = arith.constant 0 : index
    %48 = vector.load %arg2[%c0_15, %c0_16] : memref<16x1xi32, #tpu.memory_space<vmem>>, vector<16x1xi32>
    %49 = vector.broadcast %48 : vector<16x1xi32> to vector<16x128xi32>
    %50 = arith.cmpi eq, %46, %49 : vector<16x128xi32>
    %cst_17 = arith.constant 0.000000e+00 : f32
    %51 = vector.broadcast %cst_17 : f32 to vector<16x128xf32>
    %52 = arith.select %50, %45, %51 : vector<16x128xi1>, vector<16x128xf32>
    %cst_18 = arith.constant dense<0.000000e+00> : vector<16xf32>
    %53 = vector.multi_reduction <add>, %52, %cst_18 [1] : vector<16x128xf32> to vector<16xf32>
    %54 = vector.shape_cast %53 : vector<16xf32> to vector<16x1xf32>
    %cst_19 = arith.constant 9.99999984E+17 : f32
    %55 = vector.broadcast %cst_19 : f32 to vector<16x128xf32>
    %56 = arith.select %50, %55, %45 : vector<16x128xi1>, vector<16x128xf32>
    %cst_20 = arith.constant dense<0x7F800000> : vector<16xf32>
    %57 = vector.multi_reduction <minimumf>, %56, %cst_20 [1] : vector<16x128xf32> to vector<16xf32>
    %58 = vector.shape_cast %57 : vector<16xf32> to vector<16x1xf32>
    %59 = vector.broadcast %58 : vector<16x1xf32> to vector<16x128xf32>
    %60 = arith.cmpf oeq, %56, %59 : vector<16x128xf32>
    %cst_21 = arith.constant 1.280000e+02 : f32
    %61 = vector.broadcast %cst_21 : f32 to vector<16x128xf32>
    %62 = arith.select %60, %47, %61 : vector<16x128xi1>, vector<16x128xf32>
    %cst_22 = arith.constant dense<0x7F800000> : vector<16xf32>
    %63 = vector.multi_reduction <minimumf>, %62, %cst_22 [1] : vector<16x128xf32> to vector<16xf32>
    %64 = vector.shape_cast %63 : vector<16xf32> to vector<16x1xf32>
    %65 = vector.broadcast %64 : vector<16x1xf32> to vector<16x128xf32>
    %66 = arith.cmpf oeq, %47, %65 : vector<16x128xf32>
    %67 = arith.andi %60, %66 : vector<16x128xi1>
    %cst_23 = arith.constant 9.99999984E+17 : f32
    %68 = vector.broadcast %cst_23 : f32 to vector<16x128xf32>
    %69 = arith.select %67, %68, %56 : vector<16x128xi1>, vector<16x128xf32>
    %cst_24 = arith.constant dense<0x7F800000> : vector<16xf32>
    %70 = vector.multi_reduction <minimumf>, %69, %cst_24 [1] : vector<16x128xf32> to vector<16xf32>
    %71 = vector.shape_cast %70 : vector<16xf32> to vector<16x1xf32>
    %cst_25 = arith.constant 1.000000e+00 : f32
    %72 = vector.broadcast %cst_25 : f32 to vector<16x1xf32>
    %73 = arith.subf %54, %72 : vector<16x1xf32>
    %cst_26 = arith.constant 9.99999993E-9 : f32
    %74 = vector.broadcast %cst_26 : f32 to vector<16x1xf32>
    %75 = arith.maximumf %73, %74 : vector<16x1xf32>
    %cst_27 = arith.constant 1.000000e+00 : f32
    %76 = vector.broadcast %cst_27 : f32 to vector<16x1xf32>
    %77 = arith.addf %54, %76 : vector<16x1xf32>
    %78 = arith.mulf %75, %77 : vector<16x1xf32>
    %79 = math.sqrt %78 : vector<16x1xf32>
    %80 = arith.addf %54, %79 : vector<16x1xf32>
    %81 = math.log %80 : vector<16x1xf32>
    %cst_28 = arith.constant 1.000000e+00 : f32
    %82 = vector.broadcast %cst_28 : f32 to vector<16x1xf32>
    %83 = arith.mulf %81, %82 : vector<16x1xf32>
    %cst_29 = arith.constant 1.000000e+00 : f32
    %84 = vector.broadcast %cst_29 : f32 to vector<16x1xf32>
    %85 = arith.subf %58, %84 : vector<16x1xf32>
    %cst_30 = arith.constant 9.99999993E-9 : f32
    %86 = vector.broadcast %cst_30 : f32 to vector<16x1xf32>
    %87 = arith.maximumf %85, %86 : vector<16x1xf32>
    %cst_31 = arith.constant 1.000000e+00 : f32
    %88 = vector.broadcast %cst_31 : f32 to vector<16x1xf32>
    %89 = arith.addf %58, %88 : vector<16x1xf32>
    %90 = arith.mulf %87, %89 : vector<16x1xf32>
    %91 = math.sqrt %90 : vector<16x1xf32>
    %92 = arith.addf %58, %91 : vector<16x1xf32>
    %93 = math.log %92 : vector<16x1xf32>
    %cst_32 = arith.constant 1.000000e+00 : f32
    %94 = vector.broadcast %cst_32 : f32 to vector<16x1xf32>
    %95 = arith.mulf %93, %94 : vector<16x1xf32>
    %cst_33 = arith.constant 1.000000e+00 : f32
    %96 = vector.broadcast %cst_33 : f32 to vector<16x1xf32>
    %97 = arith.subf %71, %96 : vector<16x1xf32>
    %cst_34 = arith.constant 9.99999993E-9 : f32
    %98 = vector.broadcast %cst_34 : f32 to vector<16x1xf32>
    %99 = arith.maximumf %97, %98 : vector<16x1xf32>
    %cst_35 = arith.constant 1.000000e+00 : f32
    %100 = vector.broadcast %cst_35 : f32 to vector<16x1xf32>
    %101 = arith.addf %71, %100 : vector<16x1xf32>
    %102 = arith.mulf %99, %101 : vector<16x1xf32>
    %103 = math.sqrt %102 : vector<16x1xf32>
    %104 = arith.addf %71, %103 : vector<16x1xf32>
    %105 = math.log %104 : vector<16x1xf32>
    %cst_36 = arith.constant 1.000000e+00 : f32
    %106 = vector.broadcast %cst_36 : f32 to vector<16x1xf32>
    %107 = arith.mulf %105, %106 : vector<16x1xf32>
    %108 = arith.minimumf %83, %95 : vector<16x1xf32>
    %109 = arith.subf %83, %108 : vector<16x1xf32>
    %cst_37 = arith.constant 0.000000e+00 : f32
    %110 = vector.broadcast %cst_37 : f32 to vector<16x1xf32>
    %111 = arith.subf %110, %109 : vector<16x1xf32>
    %cst_38 = arith.constant 1.000000e+00 : f32
    %112 = vector.broadcast %cst_38 : f32 to vector<16x1xf32>
    %113 = arith.mulf %111, %112 : vector<16x1xf32>
    %114 = math.exp %113 : vector<16x1xf32>
    %115 = arith.subf %95, %108 : vector<16x1xf32>
    %cst_39 = arith.constant 0.000000e+00 : f32
    %116 = vector.broadcast %cst_39 : f32 to vector<16x1xf32>
    %117 = arith.subf %116, %115 : vector<16x1xf32>
    %cst_40 = arith.constant 1.000000e+00 : f32
    %118 = vector.broadcast %cst_40 : f32 to vector<16x1xf32>
    %119 = arith.mulf %117, %118 : vector<16x1xf32>
    %120 = math.exp %119 : vector<16x1xf32>
    %121 = arith.addf %114, %120 : vector<16x1xf32>
    %122 = arith.subf %107, %108 : vector<16x1xf32>
    %cst_41 = arith.constant 0.000000e+00 : f32
    %123 = vector.broadcast %cst_41 : f32 to vector<16x1xf32>
    %124 = arith.subf %123, %122 : vector<16x1xf32>
    %cst_42 = arith.constant 1.000000e+00 : f32
    %125 = vector.broadcast %cst_42 : f32 to vector<16x1xf32>
    %126 = arith.mulf %124, %125 : vector<16x1xf32>
    %127 = math.exp %126 : vector<16x1xf32>
    %128 = arith.addf %121, %127 : vector<16x1xf32>
    %129 = math.log %128 : vector<16x1xf32>
    %130 = arith.subf %83, %108 : vector<16x1xf32>
    %cst_43 = arith.constant 1.000000e+00 : f32
    %131 = vector.broadcast %cst_43 : f32 to vector<16x1xf32>
    %132 = arith.mulf %130, %131 : vector<16x1xf32>
    %133 = arith.addf %129, %132 : vector<16x1xf32>
    %c0_44 = arith.constant 0 : index
    %c0_45 = arith.constant 0 : index
    %134 = vector.load %arg4[%c0_44, %c0_45] : memref<16x1xf32, #tpu.memory_space<vmem>>, vector<16x1xf32>
    tpu.vector_store %arg4[%c0_44, %c0_45], %133 {strides = array<i32>} : memref<16x1xf32, #tpu.memory_space<vmem>>, vector<16x1xf32>,
    return
  }
  func.func @transform_0(%arg0: i32) -> (i32, i32) {
    %c0_i32 = arith.constant 0 : i32
    %c0_i32_0 = arith.constant 0 : i32
    return %arg0, %c0_i32 : i32, i32
  }
  func.func @transform_1(%arg0: i32) -> (i32, i32) {
    %c0_i32 = arith.constant 0 : i32
    %c0_i32_0 = arith.constant 0 : i32
    return %arg0, %c0_i32 : i32, i32
  }
  func.func @transform_2(%arg0: i32) -> (i32, i32) {
    %c0_i32 = arith.constant 0 : i32
    %c0_i32_0 = arith.constant 0 : i32
    %c0_i32_1 = arith.constant 0 : i32
    return %c0_i32, %c0_i32_0 : i32, i32
  }
  func.func @transform_3(%arg0: i32) -> (i32, i32) {
    %c0_i32 = arith.constant 0 : i32
    %c0_i32_0 = arith.constant 0 : i32
    return %arg0, %c0_i32 : i32, i32
  }
}

</mosaic_0001>

<llo_original>
// kernel: tpu_custom_call.1
$region0: #{tpu_custom_call.1}
  #allocation0 [shape = 'u32[]', space=smem, size = 0x4, offset = 0x4, fixed_abs, tag = 'smem constant byte address 0x4 - core index']
  #allocation1 [shape = 'u32[144,128]{1,0:T(1,128)}', space=vmem, size = 0x12000, scoped, tag = 'internal scratch']
  %s0 = inlined_call_operand.vmem [shape: f32[16,128], index: 0, kind: input, shape index: {}]
  %s1 = inlined_call_operand.vmem [shape: s32[16,1], index: 1, kind: input, shape index: {}]
  %s2 = inlined_call_operand.hbm [shape: f32[128,128], index: 2, kind: input, shape index: {}]
  %s3 = inlined_call_operand.vmem [shape: f32[16,1], index: 3, kind: output, shape index: {}]
  %s4 = sld [smem:[#allocation0]]
  $region26: #{tpu_custom_call.1} parent=0
    _
  %s6 = ssub.s32 1, %s4
  %s7 = scalar_select 0, %s6, %s4
  $region1: #{tpu_custom_call.1} parent=0
    #allocation2 [shape = 'u8[65536]{0}', space=vmem, size = 0x10000, scoped, tag = 'input window, operand 2, single buffered']
    #allocation3 [shape = 's32[1]{0}', space=sflag, size = 0x4, scoped, tag = 'scoped memory for tpu_custom_call.1']
    %8 = vsyncpa [#allocation3], 0
    // Predicated region
    $region2: #{tpu_custom_call.1} parent=1 // pred_check
      _
    $region3: #{tpu_custom_call.1} parent=1 // pred_check_branch
      %10 = sbr.rel (0) target = $region5
    $region4: #{tpu_custom_call.1} parent=1 // pred_region
      _
    $region5: #{tpu_custom_call.1} parent=1 // pred_fallthru
      _
    // Predicated region
    $region6: #{tpu_custom_call.1} parent=1 // pred_check
      _
    $region7: #{tpu_custom_call.1} parent=1 // pred_check_branch
      %12 = sbr.rel (0) target = $region9
    $region8: #{tpu_custom_call.1} parent=1 // pred_region
      _
    $region9: #{tpu_custom_call.1} parent=1 // pred_fallthru
      _
    // Predicated region
    $region10: #{tpu_custom_call.1} parent=1 // pred_check
      _
    $region11: #{tpu_custom_call.1} parent=1 // pred_check_branch
      %14 = sbr.rel (0) target = $region13
    $region12: #{tpu_custom_call.1} parent=1 // pred_region
      %s16 = ssub.s32 2048, 2048
      %17 = vsyncadd [#allocation3], %s16
      %s18 = sshll.u32 [#allocation2], 4
      %s19 = int_to_ptr.vmem [resolvable:$true] %s18
      %24 = dma.hbm_to_vmem [thread:$0]  %s2, 2048, %s19, [#allocation3], 128, 128, 8
    $region13: #{tpu_custom_call.1} parent=1 // pred_fallthru
      _
    // Predicated region
    $region14: #{tpu_custom_call.1} parent=1 // pred_check
      _
    $region15: #{tpu_custom_call.1} parent=1 // pred_check_branch
      %26 = sbr.rel (0) target = $region17
    $region16: #{tpu_custom_call.1} parent=1 // pred_region
      %27 = dma.done [#allocation3], 2048
    $region17: #{tpu_custom_call.1} parent=1 // pred_fallthru
      _
    %v28 = vld [vmem:[%s0] sm:$0xff]
    %v29 = vld [vmem:[%s0 + $0x8] sm:$0xff]
    %v30 = vmul.f32 %v28, %v28
    %v31 = vmul.f32 %v29, %v29
    %32 = vadd.xlane.f32.xlu0 %v30
    %v33 = vpop.xlane.xlu0 %32
    %34 = vadd.xlane.f32.xlu0 %v31
    %v35 = vpop.xlane.xlu0 %34
    %v36 = vmul.f32 %v33, 0.03125
    %v37 = vmul.f32 %v35, 0.03125
    %v38 = vrsqrt.pop %v36
    %v39 = vmul.f32 %v36, %v38
    %vm40 = vcmp.eq.f32.partialorder %v36, inf
    %v41 = vsel %vm40, %v36, %v39
    %vm42 = vcmp.eq.f32.partialorder %v36, 0.0
    %v43 = vand.u32 %v36, 2147483648
    %v44 = vsel %vm42, %v43, %v41
    %v45 = vrsqrt.pop %v37
    %v46 = vmul.f32 %v37, %v45
    %vm47 = vcmp.eq.f32.partialorder %v37, inf
    %v48 = vsel %vm47, %v37, %v46
    %vm49 = vcmp.eq.f32.partialorder %v37, 0.0
    %v50 = vand.u32 %v37, 2147483648
    %v51 = vsel %vm49, %v50, %v48
    %v52 = vmax.f32 %v44, 1e-08
    %v53 = vmax.f32 %v51, 1e-08
    %v54 = vmin.f32 %v52, 11.090355
    %v55 = vmin.f32 %v53, 11.090355
    %v56 = vmul.f32 %v54, 1.442695
    %v57 = vpow.pop %v56
    %v58 = vmul.f32 %v55, 1.442695
    %v59 = vpow.pop %v58
    %v60 = vsub.f32 0.0, %v54
    %v61 = vsub.f32 0.0, %v55
    %v62 = vmul.f32 %v60, 1.442695
    %v63 = vpow.pop %v62
    %v64 = vmul.f32 %v61, 1.442695
    %v65 = vpow.pop %v64
    %v66 = vsub.f32 %v57, %v63
    %v67 = vsub.f32 %v59, %v65
    %v68 = vmul.f32 %v66, 0.5
    %v69 = vmul.f32 %v67, 0.5
    %v70 = vrcp.pop %v52
    %v71 = vmul.f32 %v68, %v70
    %v72 = vrcp.pop %v53
    %v73 = vmul.f32 %v69, %v72
    %v74 = vmul.f32 %v71, 0.17677669
    %v75 = vmul.f32 %v73, 0.17677669
    %v76 = vmul.f32 %v28, %v74
    %v77 = vmul.f32 %v29, %v75
    %v78 = vmul.f32 %v71, %v71
    %v79 = vmul.f32 %v73, %v73
    %v80 = vmul.f32 %v78, %v36
    %v81 = vmul.f32 %v79, %v37
    %v82 = vadd.f32 %v80, 1.0
    %v83 = vadd.f32 %v81, 1.0
    %v84 = vrsqrt.pop %v82
    %v85 = vmul.f32 %v82, %v84
    %vm86 = vcmp.eq.f32.partialorder %v82, inf
    %v87 = vsel %vm86, %v82, %v85
    %vm88 = vcmp.eq.f32.partialorder %v82, 0.0
    %v89 = vand.u32 %v82, 2147483648
    %v90 = vsel %vm88, %v89, %v87
    %v91 = vrsqrt.pop %v83
    %v92 = vmul.f32 %v83, %v91
    %vm93 = vcmp.eq.f32.partialorder %v83, inf
    %v94 = vsel %vm93, %v83, %v92
    %vm95 = vcmp.eq.f32.partialorder %v83, 0.0
    %v96 = vand.u32 %v83, 2147483648
    %v97 = vsel %vm95, %v96, %v94
    %v98 = vlaneseq
    %v99 = vand.u32 %v98, 127
    %vm100 = vcmp.eq.s32.totalorder %v99, 32
    %v101 = vsel %vm100, 1, 0
    %vm102 = vcmp.eq.s32.totalorder %v101, 1
    %v103 = vsel %vm102, %v90, %v76
    %v104 = vsel %vm102, %v97, %v77
    %v105 = vld [vmem:[#allocation2] sm:$0xff]
    %v106 = vld [vmem:[#allocation2 + $0x8] sm:$0xff]
    %v107 = vld [vmem:[#allocation2 + $0x10] sm:$0xff]
    %v108 = vld [vmem:[#allocation2 + $0x18] sm:$0xff]
    %v109 = vld [vmem:[#allocation2 + $0x20] sm:$0xff]
    %v110 = vld [vmem:[#allocation2 + $0x28] sm:$0xff]
    %v111 = vld [vmem:[#allocation2 + $0x30] sm:$0xff]
    %v112 = vld [vmem:[#allocation2 + $0x38] sm:$0xff]
    %v113 = vld [vmem:[#allocation2 + $0x40] sm:$0xff]
    %v114 = vld [vmem:[#allocation2 + $0x48] sm:$0xff]
    %v115 = vld [vmem:[#allocation2 + $0x50] sm:$0xff]
    %v116 = vld [vmem:[#allocation2 + $0x58] sm:$0xff]
    %v117 = vld [vmem:[#allocation2 + $0x60] sm:$0xff]
    %v118 = vld [vmem:[#allocation2 + $0x68] sm:$0xff]
    %v119 = vld [vmem:[#allocation2 + $0x70] sm:$0xff]
    %v120 = vld [vmem:[#allocation2 + $0x78] sm:$0xff]
    %121 = vmatprep.subr.mxu0 0.0
    %122 = vmatpush1.xpose.msra.mxu0 %v105
    %123 = vmatprep.subr.mxu0 0.0
    %124 = vmatpush1.xpose.msra.mxu0 %v106
    %125 = vmatprep.subr.mxu0 0.0
    %126 = vmatpush1.xpose.msra.mxu0 %v107
    %127 = vmatprep.subr.mxu0 0.0
    %128 = vmatpush1.xpose.msra.mxu0 %v108
    %129 = vmatprep.subr.mxu0 0.0
    %130 = vmatpush1.xpose.msra.mxu0 %v109
    %131 = vmatprep.subr.mxu0 0.0
    %132 = vmatpush1.xpose.msra.mxu0 %v110
    %133 = vmatprep.subr.mxu0 0.0
    %134 = vmatpush1.xpose.msra.mxu0 %v111
    %135 = vmatprep.subr.mxu0 0.0
    %136 = vmatpush1.xpose.msra.mxu0 %v112
    %137 = vmatprep.subr.mxu0 0.0
    %138 = vmatpush1.xpose.msra.mxu0 %v113
    %139 = vmatprep.subr.mxu0 0.0
    %140 = vmatpush1.xpose.msra.mxu0 %v114
    %141 = vmatprep.subr.mxu0 0.0
    %142 = vmatpush1.xpose.msra.mxu0 %v115
    %143 = vmatprep.subr.mxu0 0.0
    %144 = vmatpush1.xpose.msra.mxu0 %v116
    %145 = vmatprep.subr.mxu0 0.0
    %146 = vmatpush1.xpose.msra.mxu0 %v117
    %147 = vmatprep.subr.mxu0 0.0
    %148 = vmatpush1.xpose.msra.mxu0 %v118
    %149 = vmatprep.subr.mxu0 0.0
    %150 = vmatpush1.xpose.msra.mxu0 %v119
    %151 = vmatprep.subr.mxu0 0.0
    %152 = vmatpush1.xpose.msra.mxu0 %v120
    %153 = vmatprep.subr.mxu0 0.0
    %154 = vmatpush1.xpose.msra.mxu0 0.0
    %155 = vmatprep.subr.mxu0 0.0
    %156 = vmatpush1.xpose.msra.mxu0 0.0
    %157 = vmatprep.subr.mxu0 0.0
    %158 = vmatpush1.xpose.msra.mxu0 0.0
    %159 = vmatprep.subr.mxu0 0.0
    %160 = vmatpush1.xpose.msra.mxu0 0.0
    %161 = vmatprep.subr.mxu0 0.0
    %162 = vmatpush1.xpose.msra.mxu0 0.0
    %163 = vmatprep.subr.mxu0 0.0
    %164 = vmatpush1.xpose.msra.mxu0 0.0
    %165 = vmatprep.subr.mxu0 0.0
    %166 = vmatpush1.xpose.msra.mxu0 0.0
    %167 = vmatprep.subr.mxu0 0.0
    %168 = vmatpush1.xpose.msra.mxu0 0.0
    %169 = vmatprep.subr.mxu0 0.0
    %170 = vmatpush1.xpose.msra.mxu0 0.0
    %171 = vmatprep.subr.mxu0 0.0
    %172 = vmatpush1.xpose.msra.mxu0 0.0
    %173 = vmatprep.subr.mxu0 0.0
    %174 = vmatpush1.xpose.msra.mxu0 0.0
    %175 = vmatprep.subr.mxu0 0.0
    %176 = vmatpush1.xpose.msra.mxu0 0.0
    %177 = vmatprep.subr.mxu0 0.0
    %178 = vmatpush1.xpose.msra.mxu0 0.0
    %179 = vmatprep.subr.mxu0 0.0
    %180 = vmatpush1.xpose.msra.mxu0 0.0
    %181 = vmatprep.subr.mxu0 0.0
    %182 = vmatpush1.xpose.msra.mxu0 0.0
    %183 = vmatprep.subr.mxu0 0.0
    %184 = vmatpush1.xpose.msra.mxu0 0.0
    %185 = vmatprep.mubr.f32.mxu0 0.0
    %186 = vmatmul.mubr.f32.gmra.mrb[0].mxu0 %v103
    %v187 = vpop.f32.mrb[0].mxu0
    %v188 = vadd.f32 0.0, %v187
    %v189 = vpop.f32.mrb[0].mxu0
    %190 = vmatprep.mubr.f32.mxu0 0.0
    %191 = vmatmul.mubr.f32.gmra.mrb[0].mxu0 %v104
    %v192 = vpop.f32.mrb[0].mxu0
    %v193 = vadd.f32 0.0, %v192
    %v194 = vpop.f32.mrb[0].mxu0
    %195 = vdwg.mxu0
    %v196 = vmul.f32 %v188, -1.0
    %v197 = vmul.f32 %v193, -1.0
    %v198 = vmax.f32 %v196, 1.0
    %v199 = vmax.f32 %v197, 1.0
    %v200 = vcvt.s32.f32 %v99
    %v201 = vld [vmem:[%s1] sm:$0xff]
    %v202 = vld [vmem:[%s1 + $0x8] sm:$0xff]
    %203 = vset.pattern.permute.xlu0 0
    %204 = vperm.xlu0 %203, %v201
    %v205 = vpop.permute.xlu0 %204
    %206 = vset.pattern.permute.xlu0 0
    %207 = vperm.xlu0 %206, %v202
    %v208 = vpop.permute.xlu0 %207
    %vm209 = vcmp.eq.s32.totalorder %v99, %v205
    %vm210 = vcmp.eq.s32.totalorder %v99, %v208
    %v211 = vsel %vm209, %v198, 0.0
    %v212 = vsel %vm210, %v199, 0.0
    %213 = vadd.xlane.f32.xlu0 %v211
    %v214 = vpop.xlane.xlu0 %213
    %215 = vadd.xlane.f32.xlu0 %v212
    %v216 = vpop.xlane.xlu0 %215
    %v217 = vsel %vm209, 1e+18, %v198
    %v218 = vsel %vm210, 1e+18, %v199
    %219 = vmin.xlane.f32.xlu0 %v217
    %v220 = vpop.xlane.xlu0 %219
    %221 = vmin.xlane.f32.xlu0 %v218
    %v222 = vpop.xlane.xlu0 %221
    %vm223 = vcmp.eq.f32.partialorder %v217, %v220
    %vm224 = vcmp.eq.f32.partialorder %v218, %v222
    %v225 = vsel %vm223, %v200, 128.0
    %v226 = vsel %vm224, %v200, 128.0
    %227 = vmin.xlane.f32.xlu0 %v225
    %v228 = vpop.xlane.xlu0 %227
    %229 = vmin.xlane.f32.xlu0 %v226
    %v230 = vpop.xlane.xlu0 %229
    %vm231 = vcmp.eq.f32.partialorder %v200, %v228
    %vm232 = vcmp.eq.f32.partialorder %v200, %v230
    %vm233 = vmand %vm223, %vm231
    %vm234 = vmand %vm224, %vm232
    %v235 = vsel %vm233, 1e+18, %v217
    %v236 = vsel %vm234, 1e+18, %v218
    %237 = vmin.xlane.f32.xlu0 %v235
    %v238 = vpop.xlane.xlu0 %237
    %239 = vmin.xlane.f32.xlu0 %v236
    %v240 = vpop.xlane.xlu0 %239
    %v241 = vsub.f32 %v214, 1.0
    %v242 = vsub.f32 %v216, 1.0
    %v243 = vmax.f32 %v241, 1e-08
    %v244 = vmax.f32 %v242, 1e-08
    %v245 = vadd.f32 %v214, 1.0
    %v246 = vadd.f32 %v216, 1.0
    %v247 = vmul.f32 %v243, %v245
    %v248 = vmul.f32 %v244, %v246
    %v249 = vrsqrt.pop %v247
    %v250 = vmul.f32 %v247, %v249
    %vm251 = vcmp.eq.f32.partialorder %v247, inf
    %v252 = vsel %vm251, %v247, %v250
    %vm253 = vcmp.eq.f32.partialorder %v247, 0.0
    %v254 = vand.u32 %v247, 2147483648
    %v255 = vsel %vm253, %v254, %v252
    %v256 = vrsqrt.pop %v248
    %v257 = vmul.f32 %v248, %v256
    %vm258 = vcmp.eq.f32.partialorder %v248, inf
    %v259 = vsel %vm258, %v248, %v257
    %vm260 = vcmp.eq.f32.partialorder %v248, 0.0
    %v261 = vand.u32 %v248, 2147483648
    %v262 = vsel %vm260, %v261, %v259
    %v263 = vadd.f32 %v214, %v255
    %v264 = vadd.f32 %v216, %v262
    %v265 = vlog2.pop %v263
    %v266 = vmul.f32 %v265, 0.6931472
    %v267 = vlog2.pop %v264
    %v268 = vmul.f32 %v267, 0.6931472
    %v269 = vsub.f32 %v220, 1.0
    %v270 = vsub.f32 %v222, 1.0
    %v271 = vmax.f32 %v269, 1e-08
    %v272 = vmax.f32 %v270, 1e-08
    %v273 = vadd.f32 %v220, 1.0
    %v274 = vadd.f32 %v222, 1.0
    %v275 = vmul.f32 %v271, %v273
    %v276 = vmul.f32 %v272, %v274
    %v277 = vrsqrt.pop %v275
    %v278 = vmul.f32 %v275, %v277
    %vm279 = vcmp.eq.f32.partialorder %v275, inf
    %v280 = vsel %vm279, %v275, %v278
    %vm281 = vcmp.eq.f32.partialorder %v275, 0.0
    %v282 = vand.u32 %v275, 2147483648
    %v283 = vsel %vm281, %v282, %v280
    %v284 = vrsqrt.pop %v276
    %v285 = vmul.f32 %v276, %v284
    %vm286 = vcmp.eq.f32.partialorder %v276, inf
    %v287 = vsel %vm286, %v276, %v285
    %vm288 = vcmp.eq.f32.partialorder %v276, 0.0
    %v289 = vand.u32 %v276, 2147483648
    %v290 = vsel %vm288, %v289, %v287
    %v291 = vadd.f32 %v220, %v283
    %v292 = vadd.f32 %v222, %v290
    %v293 = vlog2.pop %v291
    %v294 = vmul.f32 %v293, 0.6931472
    %v295 = vlog2.pop %v292
    %v296 = vmul.f32 %v295, 0.6931472
    %v297 = vsub.f32 %v238, 1.0
    %v298 = vsub.f32 %v240, 1.0
    %v299 = vmax.f32 %v297, 1e-08
    %v300 = vmax.f32 %v298, 1e-08
    %v301 = vadd.f32 %v238, 1.0
    %v302 = vadd.f32 %v240, 1.0
    %v303 = vmul.f32 %v299, %v301
    %v304 = vmul.f32 %v300, %v302
    %v305 = vrsqrt.pop %v303
    %v306 = vmul.f32 %v303, %v305
    %vm307 = vcmp.eq.f32.partialorder %v303, inf
    %v308 = vsel %vm307, %v303, %v306
    %vm309 = vcmp.eq.f32.partialorder %v303, 0.0
    %v310 = vand.u32 %v303, 2147483648
    %v311 = vsel %vm309, %v310, %v308
    %v312 = vrsqrt.pop %v304
    %v313 = vmul.f32 %v304, %v312
    %vm314 = vcmp.eq.f32.partialorder %v304, inf
    %v315 = vsel %vm314, %v304, %v313
    %vm316 = vcmp.eq.f32.partialorder %v304, 0.0
    %v317 = vand.u32 %v304, 2147483648
    %v318 = vsel %vm316, %v317, %v315
    %v319 = vadd.f32 %v238, %v311
    %v320 = vadd.f32 %v240, %v318
    %v321 = vlog2.pop %v319
    %v322 = vmul.f32 %v321, 0.6931472
    %v323 = vlog2.pop %v320
    %v324 = vmul.f32 %v323, 0.6931472
    %v325 = vmin.f32 %v266, %v294
    %v326 = vmin.f32 %v268, %v296
    %v327 = vsub.f32 %v266, %v325
    %v328 = vsub.f32 %v268, %v326
    %v329 = vsub.f32 0.0, %v327
    %v330 = vsub.f32 0.0, %v328
    %v331 = vmul.f32 %v329, 1.442695
    %v332 = vpow.pop %v331
    %v333 = vmul.f32 %v330, 1.442695
    %v334 = vpow.pop %v333
    %v335 = vsub.f32 %v294, %v325
    %v336 = vsub.f32 %v296, %v326
    %v337 = vsub.f32 0.0, %v335
    %v338 = vsub.f32 0.0, %v336
    %v339 = vmul.f32 %v337, 1.442695
    %v340 = vpow.pop %v339
    %v341 = vmul.f32 %v338, 1.442695
    %v342 = vpow.pop %v341
    %v343 = vadd.f32 %v332, %v340
    %v344 = vadd.f32 %v334, %v342
    %v345 = vsub.f32 %v322, %v325
    %v346 = vsub.f32 %v324, %v326
    %v347 = vsub.f32 0.0, %v345
    %v348 = vsub.f32 0.0, %v346
    %v349 = vmul.f32 %v347, 1.442695
    %v350 = vpow.pop %v349
    %v351 = vmul.f32 %v348, 1.442695
    %v352 = vpow.pop %v351
    %v353 = vadd.f32 %v343, %v350
    %v354 = vadd.f32 %v344, %v352
    %v355 = vlog2.pop %v353
    %v356 = vmul.f32 %v355, 0.6931472
    %v357 = vlog2.pop %v354
    %v358 = vmul.f32 %v357, 0.6931472
    %v359 = vadd.f32 %v356, %v327
    %v360 = vadd.f32 %v358, %v328
    %vm361 = vcmask 7168
    %362 = vst.msk [vmem:[%s3] sm:$0xff] %vm361, %v359
    %363 = vst.msk [vmem:[%s3 + $0x8] sm:$0xff] %vm361, %v360
    // Predicated region
    $region18: #{tpu_custom_call.1} parent=1 // pred_check
      _
    $region19: #{tpu_custom_call.1} parent=1 // pred_check_branch
      %365 = sbr.rel (0) target = $region21
    $region20: #{tpu_custom_call.1} parent=1 // pred_region
      _
    $region21: #{tpu_custom_call.1} parent=1 // pred_fallthru
      _
    // Predicated region
    $region22: #{tpu_custom_call.1} parent=1 // pred_check
      _
    $region23: #{tpu_custom_call.1} parent=1 // pred_check_branch
      %367 = sbr.rel (0) target = $region25
    $region24: #{tpu_custom_call.1} parent=1 // pred_region
      _
    $region25: #{tpu_custom_call.1} parent=1 // pred_fallthru
      _
    %368 = vsyncpa [#allocation3], 1

// kernel: tpu_custom_call.1
$region0: #{tpu_custom_call.1}
  #allocation0 [shape = 'u32[]', space=smem, size = 0x4, offset = 0x4, fixed_abs, tag = 'smem constant byte address 0x4 - core index']
  #allocation1 [shape = 'u32[144,128]{1,0:T(1,128)}', space=vmem, size = 0x12000, scoped, tag = 'internal scratch']
  %s0 = inlined_call_operand.vmem [shape: f32[16,128], index: 0, kind: input, shape index: {}]
  %s1 = inlined_call_operand.vmem [shape: s32[16,1], index: 1, kind: input, shape index: {}]
  %s2 = inlined_call_operand.hbm [shape: f32[128,128], index: 2, kind: input, shape index: {}]
  %s3 = inlined_call_operand.vmem [shape: f32[16,1], index: 3, kind: output, shape index: {}]
  %s4 = sld [smem:[#allocation0]]
  $region26: #{tpu_custom_call.1} parent=0
    _
  %s6 = ssub.s32 1, %s4
  %s7 = scalar_select 0, %s6, %s4
  $region1: #{tpu_custom_call.1} parent=0
    #allocation2 [shape = 'u8[65536]{0}', space=vmem, size = 0x10000, scoped, tag = 'input window, operand 2, single buffered']
    #allocation3 [shape = 's32[1]{0}', space=sflag, size = 0x4, scoped, tag = 'scoped memory for tpu_custom_call.1']
    %8 = vsyncpa [#allocation3], 0
    // Predicated region
    $region2: #{tpu_custom_call.1} parent=1 // pred_check
      _
    $region3: #{tpu_custom_call.1} parent=1 // pred_check_branch
      %10 = sbr.rel (0) target = $region5
    $region4: #{tpu_custom_call.1} parent=1 // pred_region
      _
    $region5: #{tpu_custom_call.1} parent=1 // pred_fallthru
      _
    // Predicated region
    $region6: #{tpu_custom_call.1} parent=1 // pred_check
      _
    $region7: #{tpu_custom_call.1} parent=1 // pred_check_branch
      %12 = sbr.rel (0) target = $region9
    $region8: #{tpu_custom_call.1} parent=1 // pred_region
      _
    $region9: #{tpu_custom_call.1} parent=1 // pred_fallthru
      _
    // Predicated region
    $region10: #{tpu_custom_call.1} parent=1 // pred_check
      _
    $region11: #{tpu_custom_call.1} parent=1 // pred_check_branch
      %14 = sbr.rel (0) target = $region13
    $region12: #{tpu_custom_call.1} parent=1 // pred_region
      %s16 = ssub.s32 2048, 2048
      %17 = vsyncadd [#allocation3], %s16
      %s18 = sshll.u32 [#allocation2], 4
      %s19 = int_to_ptr.vmem [resolvable:$true] %s18
      %24 = dma.hbm_to_vmem [thread:$0]  %s2, 2048, %s19, [#allocation3], 128, 128, 8
    $region13: #{tpu_custom_call.1} parent=1 // pred_fallthru
      _
    // Predicated region
    $region14: #{tpu_custom_call.1} parent=1 // pred_check
      _
    $region15: #{tpu_custom_call.1} parent=1 // pred_check_branch
      %26 = sbr.rel (0) target = $region17
    $region16: #{tpu_custom_call.1} parent=1 // pred_region
      %27 = dma.done [#allocation3], 2048
    $region17: #{tpu_custom_call.1} parent=1 // pred_fallthru
      _
    %v28 = vld [vmem:[%s0] sm:$0xff]
    %v29 = vld [vmem:[%s0 + $0x8] sm:$0xff]
    %v30 = vmul.f32 %v28, %v28
    %v31 = vmul.f32 %v29, %v29
    %32 = vadd.xlane.f32.xlu0 %v30
    %v33 = vpop.xlane.xlu0 %32
    %34 = vadd.xlane.f32.xlu0 %v31
    %v35 = vpop.xlane.xlu0 %34
    %v36 = vmul.f32 %v33, 0.03125
    %v37 = vmul.f32 %v35, 0.03125
    %v38 = vrsqrt.pop %v36
    %v39 = vmul.f32 %v36, %v38
    %vm40 = vcmp.eq.f32.partialorder %v36, inf
    %v41 = vsel %vm40, %v36, %v39
    %vm42 = vcmp.eq.f32.partialorder %v36, 0.0
    %v43 = vand.u32 %v36, 2147483648
    %v44 = vsel %vm42, %v43, %v41
    %v45 = vrsqrt.pop %v37
    %v46 = vmul.f32 %v37, %v45
    %vm47 = vcmp.eq.f32.partialorder %v37, inf
    %v48 = vsel %vm47, %v37, %v46
    %vm49 = vcmp.eq.f32.partialorder %v37, 0.0
    %v50 = vand.u32 %v37, 2147483648
    %v51 = vsel %vm49, %v50, %v48
    %v52 = vmax.f32 %v44, 1e-08
    %v53 = vmax.f32 %v51, 1e-08
    %v54 = vmin.f32 %v52, 11.090355
    %v55 = vmin.f32 %v53, 11.090355
    %v56 = vmul.f32 %v54, 1.442695
    %v57 = vpow.pop %v56
    %v58 = vmul.f32 %v55, 1.442695
    %v59 = vpow.pop %v58
    %v60 = vsub.f32 0.0, %v54
    %v61 = vsub.f32 0.0, %v55
    %v62 = vmul.f32 %v60, 1.442695
    %v63 = vpow.pop %v62
    %v64 = vmul.f32 %v61, 1.442695
    %v65 = vpow.pop %v64
    %v66 = vsub.f32 %v57, %v63
    %v67 = vsub.f32 %v59, %v65
    %v68 = vmul.f32 %v66, 0.5
    %v69 = vmul.f32 %v67, 0.5
    %v70 = vrcp.pop %v52
    %v71 = vmul.f32 %v68, %v70
    %v72 = vrcp.pop %v53
    %v73 = vmul.f32 %v69, %v72
    %v74 = vmul.f32 %v71, 0.17677669
    %v75 = vmul.f32 %v73, 0.17677669
    %v76 = vmul.f32 %v28, %v74
    %v77 = vmul.f32 %v29, %v75
    %v78 = vmul.f32 %v71, %v71
    %v79 = vmul.f32 %v73, %v73
    %v80 = vmul.f32 %v78, %v36
    %v81 = vmul.f32 %v79, %v37
    %v82 = vadd.f32 %v80, 1.0
    %v83 = vadd.f32 %v81, 1.0
    %v84 = vrsqrt.pop %v82
    %v85 = vmul.f32 %v82, %v84
    %vm86 = vcmp.eq.f32.partialorder %v82, inf
    %v87 = vsel %vm86, %v82, %v85
    %vm88 = vcmp.eq.f32.partialorder %v82, 0.0
    %v89 = vand.u32 %v82, 2147483648
    %v90 = vsel %vm88, %v89, %v87
    %v91 = vrsqrt.pop %v83
    %v92 = vmul.f32 %v83, %v91
    %vm93 = vcmp.eq.f32.partialorder %v83, inf
    %v94 = vsel %vm93, %v83, %v92
    %vm95 = vcmp.eq.f32.partialorder %v83, 0.0
    %v96 = vand.u32 %v83, 2147483648
    %v97 = vsel %vm95, %v96, %v94
    %v98 = vlaneseq
    %v99 = vand.u32 %v98, 127
    %vm100 = vcmp.eq.s32.totalorder %v99, 32
    %v101 = vsel %vm100, 1, 0
    %vm102 = vcmp.eq.s32.totalorder %v101, 1
    %v103 = vsel %vm102, %v90, %v76
    %v104 = vsel %vm102, %v97, %v77
    %v105 = vld [vmem:[#allocation2] sm:$0xff]
    %v106 = vld [vmem:[#allocation2 + $0x8] sm:$0xff]
    %v107 = vld [vmem:[#allocation2 + $0x10] sm:$0xff]
    %v108 = vld [vmem:[#allocation2 + $0x18] sm:$0xff]
    %v109 = vld [vmem:[#allocation2 + $0x20] sm:$0xff]
    %v110 = vld [vmem:[#allocation2 + $0x28] sm:$0xff]
    %v111 = vld [vmem:[#allocation2 + $0x30] sm:$0xff]
    %v112 = vld [vmem:[#allocation2 + $0x38] sm:$0xff]
    %v113 = vld [vmem:[#allocation2 + $0x40] sm:$0xff]
    %v114 = vld [vmem:[#allocation2 + $0x48] sm:$0xff]
    %v115 = vld [vmem:[#allocation2 + $0x50] sm:$0xff]
    %v116 = vld [vmem:[#allocation2 + $0x58] sm:$0xff]
    %v117 = vld [vmem:[#allocation2 + $0x60] sm:$0xff]
    %v118 = vld [vmem:[#allocation2 + $0x68] sm:$0xff]
    %v119 = vld [vmem:[#allocation2 + $0x70] sm:$0xff]
    %v120 = vld [vmem:[#allocation2 + $0x78] sm:$0xff]
    %121 = vmatprep.subr.mxu0 0.0
    %122 = vmatpush1.xpose.msra.mxu0 %v105
    %123 = vmatprep.subr.mxu0 0.0
    %124 = vmatpush1.xpose.msra.mxu0 %v106
    %125 = vmatprep.subr.mxu0 0.0
    %126 = vmatpush1.xpose.msra.mxu0 %v107
    %127 = vmatprep.subr.mxu0 0.0
    %128 = vmatpush1.xpose.msra.mxu0 %v108
    %129 = vmatprep.subr.mxu0 0.0
    %130 = vmatpush1.xpose.msra.mxu0 %v109
    %131 = vmatprep.subr.mxu0 0.0
    %132 = vmatpush1.xpose.msra.mxu0 %v110
    %133 = vmatprep.subr.mxu0 0.0
    %134 = vmatpush1.xpose.msra.mxu0 %v111
    %135 = vmatprep.subr.mxu0 0.0
    %136 = vmatpush1.xpose.msra.mxu0 %v112
    %137 = vmatprep.subr.mxu0 0.0
    %138 = vmatpush1.xpose.msra.mxu0 %v113
    %139 = vmatprep.subr.mxu0 0.0
    %140 = vmatpush1.xpose.msra.mxu0 %v114
    %141 = vmatprep.subr.mxu0 0.0
    %142 = vmatpush1.xpose.msra.mxu0 %v115
    %143 = vmatprep.subr.mxu0 0.0
    %144 = vmatpush1.xpose.msra.mxu0 %v116
    %145 = vmatprep.subr.mxu0 0.0
    %146 = vmatpush1.xpose.msra.mxu0 %v117
    %147 = vmatprep.subr.mxu0 0.0
    %148 = vmatpush1.xpose.msra.mxu0 %v118
    %149 = vmatprep.subr.mxu0 0.0
    %150 = vmatpush1.xpose.msra.mxu0 %v119
    %151 = vmatprep.subr.mxu0 0.0
    %152 = vmatpush1.xpose.msra.mxu0 %v120
    %153 = vmatprep.subr.mxu0 0.0
    %154 = vmatpush1.xpose.msra.mxu0 0.0
    %155 = vmatprep.subr.mxu0 0.0
    %156 = vmatpush1.xpose.msra.mxu0 0.0
    %157 = vmatprep.subr.mxu0 0.0
    %158 = vmatpush1.xpose.msra.mxu0 0.0
    %159 = vmatprep.subr.mxu0 0.0
    %160 = vmatpush1.xpose.msra.mxu0 0.0
    %161 = vmatprep.subr.mxu0 0.0
    %162 = vmatpush1.xpose.msra.mxu0 0.0
    %163 = vmatprep.subr.mxu0 0.0
    %164 = vmatpush1.xpose.msra.mxu0 0.0
    %165 = vmatprep.subr.mxu0 0.0
    %166 = vmatpush1.xpose.msra.mxu0 0.0
    %167 = vmatprep.subr.mxu0 0.0
    %168 = vmatpush1.xpose.msra.mxu0 0.0
    %169 = vmatprep.subr.mxu0 0.0
    %170 = vmatpush1.xpose.msra.mxu0 0.0
    %171 = vmatprep.subr.mxu0 0.0
    %172 = vmatpush1.xpose.msra.mxu0 0.0
    %173 = vmatprep.subr.mxu0 0.0
    %174 = vmatpush1.xpose.msra.mxu0 0.0
    %175 = vmatprep.subr.mxu0 0.0
    %176 = vmatpush1.xpose.msra.mxu0 0.0
    %177 = vmatprep.subr.mxu0 0.0
    %178 = vmatpush1.xpose.msra.mxu0 0.0
    %179 = vmatprep.subr.mxu0 0.0
    %180 = vmatpush1.xpose.msra.mxu0 0.0
    %181 = vmatprep.subr.mxu0 0.0
    %182 = vmatpush1.xpose.msra.mxu0 0.0
    %183 = vmatprep.subr.mxu0 0.0
    %184 = vmatpush1.xpose.msra.mxu0 0.0
    %185 = vmatprep.mubr.f32.mxu0 0.0
    %186 = vmatmul.mubr.f32.gmra.mrb[0].mxu0 %v103
    %v187 = vpop.f32.mrb[0].mxu0
    %v188 = vadd.f32 0.0, %v187
    %v189 = vpop.f32.mrb[0].mxu0
    %190 = vmatprep.mubr.f32.mxu0 0.0
    %191 = vmatmul.mubr.f32.gmra.mrb[0].mxu0 %v104
    %v192 = vpop.f32.mrb[0].mxu0
    %v193 = vadd.f32 0.0, %v192
    %v194 = vpop.f32.mrb[0].mxu0
    %195 = vdwg.mxu0
    %v196 = vmul.f32 %v188, -1.0
    %v197 = vmul.f32 %v193, -1.0
    %v198 = vmax.f32 %v196, 1.0
    %v199 = vmax.f32 %v197, 1.0
    %v200 = vcvt.s32.f32 %v99
    %v201 = vld [vmem:[%s1] sm:$0xff]
    %v202 = vld [vmem:[%s1 + $0x8] sm:$0xff]
    %203 = vset.pattern.permute.xlu0 0
    %204 = vperm.xlu0 %203, %v201
    %v205 = vpop.permute.xlu0 %204
    %206 = vset.pattern.permute.xlu0 0
    %207 = vperm.xlu0 %206, %v202
    %v208 = vpop.permute.xlu0 %207
    %vm209 = vcmp.eq.s32.totalorder %v99, %v205
    %vm210 = vcmp.eq.s32.totalorder %v99, %v208
    %v211 = vsel %vm209, %v198, 0.0
    %v212 = vsel %vm210, %v199, 0.0
    %213 = vadd.xlane.f32.xlu0 %v211
    %v214 = vpop.xlane.xlu0 %213
    %215 = vadd.xlane.f32.xlu0 %v212
    %v216 = vpop.xlane.xlu0 %215
    %v217 = vsel %vm209, 1e+18, %v198
    %v218 = vsel %vm210, 1e+18, %v199
    %219 = vmin.xlane.f32.xlu0 %v217
    %v220 = vpop.xlane.xlu0 %219
    %221 = vmin.xlane.f32.xlu0 %v218
    %v222 = vpop.xlane.xlu0 %221
    %vm223 = vcmp.eq.f32.partialorder %v217, %v220
    %vm224 = vcmp.eq.f32.partialorder %v218, %v222
    %v225 = vsel %vm223, %v200, 128.0
    %v226 = vsel %vm224, %v200, 128.0
    %227 = vmin.xlane.f32.xlu0 %v225
    %v228 = vpop.xlane.xlu0 %227
    %229 = vmin.xlane.f32.xlu0 %v226
    %v230 = vpop.xlane.xlu0 %229
    %vm231 = vcmp.eq.f32.partialorder %v200, %v228
    %vm232 = vcmp.eq.f32.partialorder %v200, %v230
    %vm233 = vmand %vm223, %vm231
    %vm234 = vmand %vm224, %vm232
    %v235 = vsel %vm233, 1e+18, %v217
    %v236 = vsel %vm234, 1e+18, %v218
    %237 = vmin.xlane.f32.xlu0 %v235
    %v238 = vpop.xlane.xlu0 %237
    %239 = vmin.xlane.f32.xlu0 %v236
    %v240 = vpop.xlane.xlu0 %239
    %v241 = vsub.f32 %v214, 1.0
    %v242 = vsub.f32 %v216, 1.0
    %v243 = vmax.f32 %v241, 1e-08
    %v244 = vmax.f32 %v242, 1e-08
    %v245 = vadd.f32 %v214, 1.0
    %v246 = vadd.f32 %v216, 1.0
    %v247 = vmul.f32 %v243, %v245
    %v248 = vmul.f32 %v244, %v246
    %v249 = vrsqrt.pop %v247
    %v250 = vmul.f32 %v247, %v249
    %vm251 = vcmp.eq.f32.partialorder %v247, inf
    %v252 = vsel %vm251, %v247, %v250
    %vm253 = vcmp.eq.f32.partialorder %v247, 0.0
    %v254 = vand.u32 %v247, 2147483648
    %v255 = vsel %vm253, %v254, %v252
    %v256 = vrsqrt.pop %v248
    %v257 = vmul.f32 %v248, %v256
    %vm258 = vcmp.eq.f32.partialorder %v248, inf
    %v259 = vsel %vm258, %v248, %v257
    %vm260 = vcmp.eq.f32.partialorder %v248, 0.0
    %v261 = vand.u32 %v248, 2147483648
    %v262 = vsel %vm260, %v261, %v259
    %v263 = vadd.f32 %v214, %v255
    %v264 = vadd.f32 %v216, %v262
    %v265 = vlog2.pop %v263
    %v266 = vmul.f32 %v265, 0.6931472
    %v267 = vlog2.pop %v264
    %v268 = vmul.f32 %v267, 0.6931472
    %v269 = vsub.f32 %v220, 1.0
    %v270 = vsub.f32 %v222, 1.0
    %v271 = vmax.f32 %v269, 1e-08
    %v272 = vmax.f32 %v270, 1e-08
    %v273 = vadd.f32 %v220, 1.0
    %v274 = vadd.f32 %v222, 1.0
    %v275 = vmul.f32 %v271, %v273
    %v276 = vmul.f32 %v272, %v274
    %v277 = vrsqrt.pop %v275
    %v278 = vmul.f32 %v275, %v277
    %vm279 = vcmp.eq.f32.partialorder %v275, inf
    %v280 = vsel %vm279, %v275, %v278
    %vm281 = vcmp.eq.f32.partialorder %v275, 0.0
    %v282 = vand.u32 %v275, 2147483648
    %v283 = vsel %vm281, %v282, %v280
    %v284 = vrsqrt.pop %v276
    %v285 = vmul.f32 %v276, %v284
    %vm286 = vcmp.eq.f32.partialorder %v276, inf
    %v287 = vsel %vm286, %v276, %v285
    %vm288 = vcmp.eq.f32.partialorder %v276, 0.0
    %v289 = vand.u32 %v276, 2147483648
    %v290 = vsel %vm288, %v289, %v287
    %v291 = vadd.f32 %v220, %v283
    %v292 = vadd.f32 %v222, %v290
    %v293 = vlog2.pop %v291
    %v294 = vmul.f32 %v293, 0.6931472
    %v295 = vlog2.pop %v292
    %v296 = vmul.f32 %v295, 0.6931472
    %v297 = vsub.f32 %v238, 1.0
    %v298 = vsub.f32 %v240, 1.0
    %v299 = vmax.f32 %v297, 1e-08
    %v300 = vmax.f32 %v298, 1e-08
    %v301 = vadd.f32 %v238, 1.0
    %v302 = vadd.f32 %v240, 1.0
    %v303 = vmul.f32 %v299, %v301
    %v304 = vmul.f32 %v300, %v302
    %v305 = vrsqrt.pop %v303
    %v306 = vmul.f32 %v303, %v305
    %vm307 = vcmp.eq.f32.partialorder %v303, inf
    %v308 = vsel %vm307, %v303, %v306
    %vm309 = vcmp.eq.f32.partialorder %v303, 0.0
    %v310 = vand.u32 %v303, 2147483648
    %v311 = vsel %vm309, %v310, %v308
    %v312 = vrsqrt.pop %v304
    %v313 = vmul.f32 %v304, %v312
    %vm314 = vcmp.eq.f32.partialorder %v304, inf
    %v315 = vsel %vm314, %v304, %v313
    %vm316 = vcmp.eq.f32.partialorder %v304, 0.0
    %v317 = vand.u32 %v304, 2147483648
    %v318 = vsel %vm316, %v317, %v315
    %v319 = vadd.f32 %v238, %v311
    %v320 = vadd.f32 %v240, %v318
    %v321 = vlog2.pop %v319
    %v322 = vmul.f32 %v321, 0.6931472
    %v323 = vlog2.pop %v320
    %v324 = vmul.f32 %v323, 0.6931472
    %v325 = vmin.f32 %v266, %v294
    %v326 = vmin.f32 %v268, %v296
    %v327 = vsub.f32 %v266, %v325
    %v328 = vsub.f32 %v268, %v326
    %v329 = vsub.f32 0.0, %v327
    %v330 = vsub.f32 0.0, %v328
    %v331 = vmul.f32 %v329, 1.442695
    %v332 = vpow.pop %v331
    %v333 = vmul.f32 %v330, 1.442695
    %v334 = vpow.pop %v333
    %v335 = vsub.f32 %v294, %v325
    %v336 = vsub.f32 %v296, %v326
    %v337 = vsub.f32 0.0, %v335
    %v338 = vsub.f32 0.0, %v336
    %v339 = vmul.f32 %v337, 1.442695
    %v340 = vpow.pop %v339
    %v341 = vmul.f32 %v338, 1.442695
    %v342 = vpow.pop %v341
    %v343 = vadd.f32 %v332, %v340
    %v344 = vadd.f32 %v334, %v342
    %v345 = vsub.f32 %v322, %v325
    %v346 = vsub.f32 %v324, %v326
    %v347 = vsub.f32 0.0, %v345
    %v348 = vsub.f32 0.0, %v346
    %v349 = vmul.f32 %v347, 1.442695
    %v350 = vpow.pop %v349
    %v351 = vmul.f32 %v348, 1.442695
    %v352 = vpow.pop %v351
    %v353 = vadd.f32 %v343, %v350
    %v354 = vadd.f32 %v344, %v352
    %v355 = vlog2.pop %v353
    %v356 = vmul.f32 %v355, 0.6931472
    %v357 = vlog2.pop %v354
    %v358 = vmul.f32 %v357, 0.6931472
    %v359 = vadd.f32 %v356, %v327
    %v360 = vadd.f32 %v358, %v328
    %vm361 = vcmask 7168
    %362 = vst.msk [vmem:[%s3] sm:$0xff] %vm361, %v359
    %363 = vst.msk [vmem:[%s3 + $0x8] sm:$0xff] %vm361, %v360
    // Predicated region
    $region18: #{tpu_custom_call.1} parent=1 // pred_check
      _
    $region19: #{tpu_custom_call.1} parent=1 // pred_check_branch
      %365 = sbr.rel (0) target = $region21
    $region20: #{tpu_custom_call.1} parent=1 // pred_region
      _
    $region21: #{tpu_custom_call.1} parent=1 // pred_fallthru
      _
    // Predicated region
    $region22: #{tpu_custom_call.1} parent=1 // pred_check
      _
    $region23: #{tpu_custom_call.1} parent=1 // pred_check_branch
      %367 = sbr.rel (0) target = $region25
    $region24: #{tpu_custom_call.1} parent=1 // pred_region
      _
    $region25: #{tpu_custom_call.1} parent=1 // pred_fallthru
      _
    %368 = vsyncpa [#allocation3], 1

</llo_original>
